<compile_context>
chip_gen: v7x
topology: tpu7x:2x2x1
jax: 0.10.0
libtpu: 0.0.40
codegen_flags: <defaults>
</compile_context>

<pallas_src>
import functools

import numpy as np
import jax
import jax.numpy as jnp
from jax import lax
from jax.experimental import pallas as pl
from jax.experimental.pallas import tpu as pltpu

SUBLANES = 8
NUM_CORES = 2                 # v7x has 2 TCs/chip; harmless (serial) on v5e/v6e
MAX_TILE_ROWS = 65536         # sanity cap for very skinny embeddings
TARGET_BLOCK_BYTES = 4 * 1024 * 1024
MIN_BLOCK_BYTES = 128 * 1024


def _collapse_2d(shape):
    """Collapse an arbitrary shape to (rows, last_dim) -- a free reshape."""
    if len(shape) == 0:
        return 1, 1
    if len(shape) == 1:
        return 1, int(shape[0])
    rows = 1
    for s in shape[:-1]:
        rows *= int(s)
    return rows, int(shape[-1])


def _vmem_limit_bytes():
    """Generation-aware scoped-VMEM limit: 64 MiB on v5e/v6e, 48 MiB on v7x."""
    phys = 64 * 1024 * 1024            # conservative default (v7x physical)
    try:
        info = pltpu.get_tpu_info()
        phys = int(getattr(info, "vmem_capacity_bytes", phys))
    except Exception:
        pass
    return max(16 * 1024 * 1024, min(phys * 3 // 4, 64 * 1024 * 1024))


def _per_block_bytes(num_embeddings, min_itemsize, vmem_limit_bytes, override):
    if override is not None:
        return int(override)
    # Reserve headroom for the (8, D) accumulators, tiny output, prefetch
    # tables and Mosaic internal scratch.
    usable = vmem_limit_bytes - 2 * 1024 * 1024
    # 2 pipeline buffers per input (native dtype) plus ~3 f32-sized in-kernel
    # temporaries (cast, square, mask) for the active tile.
    temp_factor = 3 * max(1, 4 // max(min_itemsize, 1))
    per_block = usable // (2 * num_embeddings + temp_factor)
    return int(min(TARGET_BLOCK_BYTES, max(MIN_BLOCK_BYTES, per_block)))


def _plan_embedding(shape, itemsize, per_block_bytes):
    """Pick (rows, cols, tile_rows, num_blocks) for one embedding."""
    m, d = _collapse_2d(shape)
    # Sublane tile per dtype: 8 for 4-byte, 16 for 2-byte, 32 for 1-byte.
    align = max(SUBLANES, 32 // max(itemsize, 1))
    bytes_per_row = max(d * itemsize, 1)
    tr = per_block_bytes // bytes_per_row
    tr = min(tr, MAX_TILE_ROWS)
    tr = max(align, (tr // align) * align)
    if tr >= m:
        return m, d, m, 1          # one full-array block; no masking needed
    nblk = -(-m // tr)             # ceil div
    return m, d, tr, nblk


def _build_schedule(metas, num_cores):
    """Static per-core schedule + per-step per-input DMA (park) table."""
    k_count = len(metas)
    single_ks = [k for k, mt in enumerate(metas) if mt[3] == 1]
    multi_ks = [k for k, mt in enumerate(metas) if mt[3] > 1]

    # Split every multi-block embedding's blocks contiguously across cores.
    per_core = [[] for _ in range(num_cores)]
    for k in multi_ks:
        nblk = metas[k][3]
        base, rem = divmod(nblk, num_cores)
        start = 0
        for c in range(num_cores):
            cnt = base + (1 if c < rem else 0)
            per_core[c].extend((k, b) for b in range(start, start + cnt))
            start += cnt

    steps = max(1, max(len(pc) for pc in per_core))
    sentinel = k_count                      # "no-op" step marker

    tbl_emb = np.full((num_cores, steps), sentinel, np.int32)
    tbl_blk = np.zeros((num_cores, steps), np.int32)
    tbl_first = np.zeros((num_cores, steps), np.int32)
    tbl_last = np.zeros((num_cores, steps), np.int32)
    # Per-input, per-(core,step) block index for the DMA: active block when
    # scheduled, otherwise parked (upcoming-first before / last-used after).
    tbl_park = np.zeros((k_count, num_cores * steps), np.int32)

    for c in range(num_cores):
        sched = per_core[c]
        first_blk, last_step = {}, {}
        for i, (k, b) in enumerate(sched):
            first_blk.setdefault(k, b)
            last_step[k] = i
        cur = {k: 0 for k in range(k_count)}
        for k in multi_ks:
            cur[k] = first_blk.get(k, 0)
        seen = set()
        for i in range(steps):
            if i < len(sched):
                k, b = sched[i]
                tbl_emb[c, i] = k
                tbl_blk[c, i] = b
                tbl_first[c, i] = int(k not in seen)
                seen.add(k)
                tbl_last[c, i] = int(last_step[k] == i)
                cur[k] = b
            for kk in range(k_count):
                tbl_park[kk, c * steps + i] = cur[kk]

    return (single_ks, multi_ks, steps,
            tbl_emb, tbl_blk, tbl_first, tbl_last, tbl_park)


def _make_kernel(metas, single_ks, multi_ks):
    k_count = len(metas)

    def kernel(emb_r, blk_r, first_r, last_r, park_r, *refs):
        x_refs = refs[:k_count]
        o_ref = refs[k_count]
        acc_refs = refs[k_count + 1:]

        c = pl.program_id(0)
        i = pl.program_id(1)
        e = emb_r[c, i]          # active embedding id (or sentinel) this step
        blk = blk_r[c, i]        # block index within that embedding
        is_first = first_r[c, i]  # first block of this emb on this core
        is_last = last_r[c, i]    # last block of this emb on this core

        # Zero this core's resident (K, 1) output block once, at its first
        # step (covers embeddings this core never touches).
        @pl.when(i == 0)
        def _():
            o_ref[...] = jnp.zeros_like(o_ref)

        # All single-block embeddings are permanently resident at block 0;
        # fold them all into ONE grid step instead of one step each.
        if single_ks:
            @pl.when(jnp.logical_and(c == 0, i == 0))
            def _():
                for k in single_ks:
                    x = x_refs[k][...].astype(jnp.float32)
                    o_ref[k:k + 1, :] = jnp.sum(x * x, keepdims=True)

        # Multi-block embeddings follow the scalar-prefetched schedule.
        for j, k in enumerate(multi_ks):
            m_k, d_k, tr_k, nblk_k = metas[k]

            def process(k=k, m_k=m_k, d_k=d_k, tr_k=tr_k, nblk_k=nblk_k,
                        x_ref=x_refs[k], acc_ref=acc_refs[j]):

                def accumulate(x):
                    # Fold tile rows into the (8, d) accumulator with pure
                    # elementwise (VPU) adds -- no per-step cross-lane reduce.
                    part = (x * x).reshape(
                        tr_k // SUBLANES, SUBLANES, d_k).sum(axis=0)

                    @pl.when(is_first == 1)
                    def _():
                        acc_ref[...] = part

                    @pl.when(is_first == 0)
                    def _():
                        acc_ref[...] = acc_ref[...] + part

                x = x_ref[...].astype(jnp.float32)   # per-tile cast in VMEM

                if m_k % tr_k != 0:
                    # Only the globally-last tile is partial: mask it there
                    # (cheap (tr, 1) iota broadcast), unmasked fast path
                    # everywhere else.
                    @pl.when(blk == nblk_k - 1)
                    def _():
                        row = blk * tr_k + lax.broadcasted_iota(
                            jnp.int32, (tr_k, 1), 0)
                        accumulate(jnp.where(row < m_k, x, 0.0))

                    @pl.when(blk < nblk_k - 1)
                    def _():
                        accumulate(x)
                else:
                    accumulate(x)

                # Last block of this embedding on this core: one cross-lane
                # reduce into this core's row of the (K, 1) output block.
                @pl.when(is_last == 1)
                def _():
                    o_ref[k:k + 1, :] = jnp.sum(acc_ref[...], keepdims=True)

            pl.when(e == k)(process)

    return kernel


def _fused_sumsq(embs_2d, metas, vmem_limit_bytes):
    """Per-embedding, per-core sum of squares in one pallas_call."""
    k_count = len(embs_2d)
    (single_ks, multi_ks, steps, tbl_emb, tbl_blk,
     tbl_first, tbl_last, tbl_park) = _build_schedule(metas, NUM_CORES)

    def make_index_map(k):
        def index_map(c, i, emb_r, blk_r, first_r, last_r, park_r):
            # Host-precomputed block index: scheduled block when active,
            # otherwise parked in place -> no redundant transition DMAs.
            return (park_r[k, c * steps + i], 0)
        return index_map

    in_specs = [
        pl.BlockSpec((tr, d), make_index_map(k))
        for k, (_, d, tr, _) in enumerate(metas)
    ]
    out_spec = pl.BlockSpec(
        (None, k_count, 1),
        lambda c, i, emb_r, blk_r, first_r, last_r, park_r: (c, 0, 0))
    scratch_shapes = [
        pltpu.VMEM((SUBLANES, metas[k][1]), jnp.float32) for k in multi_ks
    ]

    out = pl.pallas_call(
        _make_kernel(tuple(metas), tuple(single_ks), tuple(multi_ks)),
        out_shape=jax.ShapeDtypeStruct((NUM_CORES, k_count, 1), jnp.float32),
        grid_spec=pltpu.PrefetchScalarGridSpec(
            num_scalar_prefetch=5,
            grid=(NUM_CORES, steps),
            in_specs=in_specs,
            out_specs=out_spec,
            scratch_shapes=scratch_shapes,
        ),
        compiler_params=pltpu.CompilerParams(
            # Leading axis = TensorCore split (uses both cores' HBM BW on
            # v7x; serial and harmless on v5e/v6e).  Inner axis accumulates
            # into resident scratch/output -> "arbitrary".
            dimension_semantics=("parallel", "arbitrary"),
            vmem_limit_bytes=int(vmem_limit_bytes),
        ),
    )(jnp.asarray(tbl_emb), jnp.asarray(tbl_blk), jnp.asarray(tbl_first),
      jnp.asarray(tbl_last), jnp.asarray(tbl_park), *embs_2d)
    return out[:, :, 0]            # (NUM_CORES, K) partial sums of squares


@functools.partial(jax.jit, static_argnames=("norm", "block_bytes"))
def emb_loss(*embeddings, norm=2, block_bytes=None):
    """JAX/Pallas equivalent of EmbLoss.forward (p=2)."""
    assert norm == 2, "kernel implements the default p=2 (Frobenius) norm"
    # TODO(synk): general p-norms would need |x|**p / **(1/p) instead of x*x / sqrt.
    k_count = len(embeddings)
    vmem_limit = _vmem_limit_bytes()
    min_itemsize = min(jnp.dtype(e.dtype).itemsize for e in embeddings)
    per_block = _per_block_bytes(k_count, min_itemsize, vmem_limit, block_bytes)

    embs_2d, metas = [], []
    for emb in embeddings:
        m, d, tr, nblk = _plan_embedding(
            emb.shape, jnp.dtype(emb.dtype).itemsize, per_block)
        embs_2d.append(emb.reshape(m, d))      # free reshape, native dtype
        metas.append((m, d, tr, nblk))

    partial = _fused_sumsq(embs_2d, metas, vmem_limit)  # (NUM_CORES, K)
    sums = jnp.sum(partial, axis=0)                     # per-embedding sum(x^2)
    total = jnp.sum(jnp.sqrt(sums))
    total = total / jnp.float32(embeddings[-1].shape[0])
    return total.reshape(1).astype(jnp.float32)


if __name__ == "__main__":
    key = jax.random.PRNGKey(0)
    k1, k2, k3, k4, k5, k6 = jax.random.split(key, 6)

    # --- Test 1: module-consistent small shapes (user/item/entity tables);
    # all single-block -> folded into one grid step.
    user_emb = jax.random.normal(k1, (8, 32), dtype=jnp.float32)
    item_emb = jax.random.normal(k2, (16, 32), dtype=jnp.float32)
    ent_emb = jax.random.normal(k3, (12, 32), dtype=jnp.float32)

    loss = jax.block_until_ready(emb_loss(user_emb, item_emb, ent_emb))
    ref = (jnp.linalg.norm(user_emb) + jnp.linalg.norm(item_emb)
           + jnp.linalg.norm(ent_emb)) / ent_emb.shape[0]
    assert loss.shape == (1,) and loss.dtype == jnp.float32
    assert jnp.allclose(loss[0], ref, rtol=1e-5, atol=1e-5)

    # --- Test 2: multi-block path (partial last-tile masking, in-kernel bf16
    # cast, per-core split + accumulators) via a tiny forced block budget.
    a = jax.random.normal(k4, (100, 32), dtype=jnp.bfloat16)
    b = jax.random.normal(k5, (64, 48), dtype=jnp.float32)
    loss2 = jax.block_until_ready(emb_loss(a, b, block_bytes=4096))
    ref2 = (jnp.linalg.norm(a.astype(jnp.float32))
            + jnp.linalg.norm(b)) / b.shape[0]
    assert jnp.allclose(loss2[0], ref2, rtol=1e-4, atol=1e-4)

    # --- Test 3: multi-block path at default (large) block sizes, mixing a
    # multi-block embedding with a resident single-block one.
    c = jax.random.normal(k6, (20000, 64), dtype=jnp.float32)
    loss3 = jax.block_until_ready(emb_loss(c, ent_emb))
    ref3 = (jnp.linalg.norm(c) + jnp.linalg.norm(ent_emb)) / ent_emb.shape[0]
    assert jnp.allclose(loss3[0], ref3, rtol=1e-4, atol=1e-4)

    print("KERNEL_OK")
</pallas_src>

<mosaic_0001>
module attributes {stable_mosaic.version = 11 : i64} {
  func.func @kernel(%arg0: i32, %arg1: i32, %arg2: memref<2x1xi32, #tpu.memory_space<smem>>, %arg3: memref<2x1xi32, #tpu.memory_space<smem>>, %arg4: memref<2x1xi32, #tpu.memory_space<smem>>, %arg5: memref<2x1xi32, #tpu.memory_space<smem>>, %arg6: memref<3x2xi32, #tpu.memory_space<smem>>, %arg7: memref<8x32xf32, #tpu.memory_space<vmem>>, %arg8: memref<16x32xf32, #tpu.memory_space<vmem>>, %arg9: memref<12x32xf32, #tpu.memory_space<vmem>>, %arg10: memref<1x3x1xf32, #tpu.memory_space<vmem>>) attributes {dimension_semantics = [#tpu.dimension_semantics<parallel>, #tpu.dimension_semantics<arbitrary>], iteration_bounds = array<i64: 2, 1>, scalar_prefetch = 5 : i64, scratch_operands = 0 : i64, tpu.core_type = #tpu.core_type<tc>, window_params = [{transform_indices = @transform_0, window_bounds = array<i64: 8, 32>}, {transform_indices = @transform_1, window_bounds = array<i64: 16, 32>}, {transform_indices = @transform_2, window_bounds = array<i64: 12, 32>}, {transform_indices = @transform_3, window_bounds = array<i64: 1, 3, 1>}]} {
    %c0_i32 = arith.constant 0 : i32
    %0 = arith.cmpi eq, %arg1, %c0_i32 : i32
    %1 = arith.extui %0 : i1 to i32
    %c0_i32_0 = arith.constant 0 : i32
    %2 = arith.cmpi ne, %1, %c0_i32_0 : i32
    scf.if %2 {
      %cst = arith.constant 0.000000e+00 : f32
      %8 = vector.broadcast %cst : f32 to vector<3x1xf32>
      %c0 = arith.constant 0 : index
      %c0_4 = arith.constant 0 : index
      %c0_5 = arith.constant 0 : index
      %9 = vector.load %arg10[%c0, %c0_4, %c0_5] : memref<1x3x1xf32, #tpu.memory_space<vmem>>, vector<1x3x1xf32>
      %10 = vector.shape_cast %9 : vector<1x3x1xf32> to vector<3x1xf32>
      %11 = vector.shape_cast %8 : vector<3x1xf32> to vector<1x3x1xf32>
      tpu.vector_store %arg10[%c0, %c0_4, %c0_5], %11 {strides = array<i32>} : memref<1x3x1xf32, #tpu.memory_space<vmem>>, vector<1x3x1xf32>,
    } else {
    }
    %c0_i32_1 = arith.constant 0 : i32
    %3 = arith.cmpi eq, %arg0, %c0_i32_1 : i32
    %c0_i32_2 = arith.constant 0 : i32
    %4 = arith.cmpi eq, %arg1, %c0_i32_2 : i32
    %5 = arith.andi %3, %4 : i1
    %6 = arith.extui %5 : i1 to i32
    %c0_i32_3 = arith.constant 0 : i32
    %7 = arith.cmpi ne, %6, %c0_i32_3 : i32
    scf.if %7 {
      %c0 = arith.constant 0 : index
      %c0_4 = arith.constant 0 : index
      %8 = vector.load %arg7[%c0, %c0_4] : memref<8x32xf32, #tpu.memory_space<vmem>>, vector<8x32xf32>
      %9 = arith.mulf %8, %8 : vector<8x32xf32>
      %10 = vector.shape_cast %9 : vector<8x32xf32> to vector<1x8x32xf32>
      %cst = arith.constant dense<0.000000e+00> : vector<1xf32>
      %11 = vector.multi_reduction <add>, %10, %cst [1, 2] : vector<1x8x32xf32> to vector<1xf32>
      %12 = vector.shape_cast %11 : vector<1xf32> to vector<1x1x1xf32>
      %13 = vector.extract %12[0, 0, 0] : f32 from vector<1x1x1xf32>
      %14 = vector.broadcast %13 : f32 to vector<1x1xf32>
      %c0_5 = arith.constant 0 : index
      %c0_6 = arith.constant 0 : index
      %c0_7 = arith.constant 0 : index
      %15 = vector.load %arg10[%c0_5, %c0_6, %c0_7] : memref<1x3x1xf32, #tpu.memory_space<vmem>>, vector<1x1x1xf32>
      %16 = vector.shape_cast %15 : vector<1x1x1xf32> to vector<1x1xf32>
      %17 = vector.shape_cast %14 : vector<1x1xf32> to vector<1x1x1xf32>
      tpu.vector_store %arg10[%c0_5, %c0_6, %c0_7], %17 {strides = array<i32>} : memref<1x3x1xf32, #tpu.memory_space<vmem>>, vector<1x1x1xf32>,
      %c0_8 = arith.constant 0 : index
      %c0_9 = arith.constant 0 : index
      %18 = vector.load %arg8[%c0_8, %c0_9] : memref<16x32xf32, #tpu.memory_space<vmem>>, vector<16x32xf32>
      %19 = arith.mulf %18, %18 : vector<16x32xf32>
      %20 = vector.shape_cast %19 : vector<16x32xf32> to vector<1x16x32xf32>
      %cst_10 = arith.constant dense<0.000000e+00> : vector<1xf32>
      %21 = vector.multi_reduction <add>, %20, %cst_10 [1, 2] : vector<1x16x32xf32> to vector<1xf32>
      %22 = vector.shape_cast %21 : vector<1xf32> to vector<1x1x1xf32>
      %23 = vector.extract %22[0, 0, 0] : f32 from vector<1x1x1xf32>
      %24 = vector.broadcast %23 : f32 to vector<1x1xf32>
      %c0_11 = arith.constant 0 : index
      %c1 = arith.constant 1 : index
      %c0_12 = arith.constant 0 : index
      %25 = vector.load %arg10[%c0_11, %c1, %c0_12] : memref<1x3x1xf32, #tpu.memory_space<vmem>>, vector<1x1x1xf32>
      %26 = vector.shape_cast %25 : vector<1x1x1xf32> to vector<1x1xf32>
      %27 = vector.shape_cast %24 : vector<1x1xf32> to vector<1x1x1xf32>
      tpu.vector_store %arg10[%c0_11, %c1, %c0_12], %27 {strides = array<i32>} : memref<1x3x1xf32, #tpu.memory_space<vmem>>, vector<1x1x1xf32>,
      %c0_13 = arith.constant 0 : index
      %c0_14 = arith.constant 0 : index
      %28 = vector.load %arg9[%c0_13, %c0_14] : memref<12x32xf32, #tpu.memory_space<vmem>>, vector<12x32xf32>
      %29 = arith.mulf %28, %28 : vector<12x32xf32>
      %30 = vector.shape_cast %29 : vector<12x32xf32> to vector<1x12x32xf32>
      %cst_15 = arith.constant dense<0.000000e+00> : vector<1xf32>
      %31 = vector.multi_reduction <add>, %30, %cst_15 [1, 2] : vector<1x12x32xf32> to vector<1xf32>
      %32 = vector.shape_cast %31 : vector<1xf32> to vector<1x1x1xf32>
      %33 = vector.extract %32[0, 0, 0] : f32 from vector<1x1x1xf32>
      %34 = vector.broadcast %33 : f32 to vector<1x1xf32>
      %c0_16 = arith.constant 0 : index
      %c2 = arith.constant 2 : index
      %c0_17 = arith.constant 0 : index
      %35 = vector.load %arg10[%c0_16, %c2, %c0_17] : memref<1x3x1xf32, #tpu.memory_space<vmem>>, vector<1x1x1xf32>
      %36 = vector.shape_cast %35 : vector<1x1x1xf32> to vector<1x1xf32>
      %37 = vector.shape_cast %34 : vector<1x1xf32> to vector<1x1x1xf32>
      tpu.vector_store %arg10[%c0_16, %c2, %c0_17], %37 {strides = array<i32>} : memref<1x3x1xf32, #tpu.memory_space<vmem>>, vector<1x1x1xf32>,
    } else {
    }
    return
  }
  func.func @transform_0(%arg0: i32, %arg1: i32, %arg2: memref<2x1xi32, #tpu.memory_space<smem>>, %arg3: memref<2x1xi32, #tpu.memory_space<smem>>, %arg4: memref<2x1xi32, #tpu.memory_space<smem>>, %arg5: memref<2x1xi32, #tpu.memory_space<smem>>, %arg6: memref<3x2xi32, #tpu.memory_space<smem>>) -> (i32, i32) {
    %c1_i32 = arith.constant 1 : i32
    %0 = arith.muli %arg0, %c1_i32 : i32
    %1 = arith.addi %0, %arg1 : i32
    %c0 = arith.constant 0 : index
    %2 = arith.index_cast %1 : i32 to index
    %3 = memref.load %arg6[%c0, %2] : memref<3x2xi32, #tpu.memory_space<smem>>
    %c0_i32 = arith.constant 0 : i32
    %c0_i32_0 = arith.constant 0 : i32
    return %3, %c0_i32 : i32, i32
  }
  func.func @transform_1(%arg0: i32, %arg1: i32, %arg2: memref<2x1xi32, #tpu.memory_space<smem>>, %arg3: memref<2x1xi32, #tpu.memory_space<smem>>, %arg4: memref<2x1xi32, #tpu.memory_space<smem>>, %arg5: memref<2x1xi32, #tpu.memory_space<smem>>, %arg6: memref<3x2xi32, #tpu.memory_space<smem>>) -> (i32, i32) {
    %c1_i32 = arith.constant 1 : i32
    %0 = arith.muli %arg0, %c1_i32 : i32
    %1 = arith.addi %0, %arg1 : i32
    %c1 = arith.constant 1 : index
    %2 = arith.index_cast %1 : i32 to index
    %3 = memref.load %arg6[%c1, %2] : memref<3x2xi32, #tpu.memory_space<smem>>
    %c0_i32 = arith.constant 0 : i32
    %c0_i32_0 = arith.constant 0 : i32
    return %3, %c0_i32 : i32, i32
  }
  func.func @transform_2(%arg0: i32, %arg1: i32, %arg2: memref<2x1xi32, #tpu.memory_space<smem>>, %arg3: memref<2x1xi32, #tpu.memory_space<smem>>, %arg4: memref<2x1xi32, #tpu.memory_space<smem>>, %arg5: memref<2x1xi32, #tpu.memory_space<smem>>, %arg6: memref<3x2xi32, #tpu.memory_space<smem>>) -> (i32, i32) {
    %c1_i32 = arith.constant 1 : i32
    %0 = arith.muli %arg0, %c1_i32 : i32
    %1 = arith.addi %0, %arg1 : i32
    %c2 = arith.constant 2 : index
    %2 = arith.index_cast %1 : i32 to index
    %3 = memref.load %arg6[%c2, %2] : memref<3x2xi32, #tpu.memory_space<smem>>
    %c0_i32 = arith.constant 0 : i32
    %c0_i32_0 = arith.constant 0 : i32
    return %3, %c0_i32 : i32, i32
  }
  func.func @transform_3(%arg0: i32, %arg1: i32, %arg2: memref<2x1xi32, #tpu.memory_space<smem>>, %arg3: memref<2x1xi32, #tpu.memory_space<smem>>, %arg4: memref<2x1xi32, #tpu.memory_space<smem>>, %arg5: memref<2x1xi32, #tpu.memory_space<smem>>, %arg6: memref<3x2xi32, #tpu.memory_space<smem>>) -> (i32, i32, i32) {
    %c0_i32 = arith.constant 0 : i32
    %c0_i32_0 = arith.constant 0 : i32
    %c0_i32_1 = arith.constant 0 : i32
    return %arg0, %c0_i32, %c0_i32_0 : i32, i32, i32
  }
}

</mosaic_0001>

<llo_original>
// kernel: emb_loss.1
$region0: #{emb_loss.1}
  #allocation0 [shape = 'u32[]', space=smem, size = 0x4, offset = 0x4, fixed_abs, tag = 'smem constant byte address 0x4 - core index']
  #allocation1 [shape = 'u32[144,128]{1,0:T(1,128)}', space=vmem, size = 0x12000, scoped, tag = 'internal scratch']
  #allocation2 [shape = 's32[1]{0}', space=sflag, size = 0x4, scoped, tag = 'scoped memory for emb_loss.1']
  #allocation3 [shape = 'u8[1024]{0}', space=smem, size = 0x400, scoped, tag = 'prefetched SMEM operand 0']
  #allocation4 [shape = 'u8[1024]{0}', space=smem, size = 0x400, scoped, tag = 'prefetched SMEM operand 1']
  #allocation5 [shape = 'u8[1024]{0}', space=smem, size = 0x400, scoped, tag = 'prefetched SMEM operand 2']
  #allocation6 [shape = 'u8[1024]{0}', space=smem, size = 0x400, scoped, tag = 'prefetched SMEM operand 3']
  #allocation7 [shape = 'u8[2048]{0}', space=smem, size = 0x800, scoped, tag = 'prefetched SMEM operand 4']
  %s0 = inlined_call_operand.vmem [shape: s32[2,1], index: 0, kind: input, shape index: {}]
  %s1 = inlined_call_operand.vmem [shape: s32[2,1], index: 1, kind: input, shape index: {}, may-alias: {1,2,3}]
  %s2 = inlined_call_operand.vmem [shape: s32[2,1], index: 2, kind: input, shape index: {}, may-alias: {1,2,3}]
  %s3 = inlined_call_operand.vmem [shape: s32[2,1], index: 3, kind: input, shape index: {}, may-alias: {1,2,3}]
  %s4 = inlined_call_operand.vmem [shape: s32[3,2], index: 4, kind: input, shape index: {}]
  %s5 = inlined_call_operand.hbm [shape: f32[8,32], index: 5, kind: input, shape index: {}]
  %s6 = inlined_call_operand.vmem [shape: f32[16,32], index: 6, kind: input, shape index: {}]
  %s7 = inlined_call_operand.hbm [shape: f32[12,32], index: 7, kind: input, shape index: {}]
  %s8 = inlined_call_operand.vmem [shape: f32[2,3,1], index: 8, kind: output, shape index: {}]
  %s9 = sld [smem:[#allocation0]]
  $region61: #{emb_loss.1} parent=0
    _
  %s11 = ssub.s32 1, %s9
  %s12 = scalar_select 0, %s11, %s9
  %s13 = sshll.u32 %s0, 4
  %s14 = int_to_ptr.vmem [resolvable:$true] %s13
  %16 = dma.vmem_to_smem %s14, 32, [#allocation3], [#allocation2]
  %s17 = sshll.u32 %s1, 4
  %s18 = int_to_ptr.vmem [resolvable:$true] %s17
  %20 = dma.vmem_to_smem %s18, 32, [#allocation4], [#allocation2]
  %s21 = sshll.u32 %s2, 4
  %s22 = int_to_ptr.vmem [resolvable:$true] %s21
  %24 = dma.vmem_to_smem %s22, 32, [#allocation5], [#allocation2]
  %s25 = sshll.u32 %s3, 4
  %s26 = int_to_ptr.vmem [resolvable:$true] %s25
  %28 = dma.vmem_to_smem %s26, 32, [#allocation6], [#allocation2]
  %s29 = sshll.u32 %s4, 4
  %s30 = int_to_ptr.vmem [resolvable:$true] %s29
  %32 = dma.vmem_to_smem %s30, 64, [#allocation7], [#allocation2]
  %33 = dma.done [#allocation2], 192
  %34 = sfence
  $region1: #{emb_loss.1} parent=0
    #allocation8 [shape = 'u8[8192]{0}', space=vmem, size = 0x2000, scoped, tag = 'input window, operand 5']
    #allocation9 [shape = 's32[2]{0}', space=sflag, size = 0x8, scoped, tag = 'scoped memory for emb_loss.1']
    #allocation10 [shape = 'u8[16384]{0}', space=vmem, size = 0x4000, scoped, tag = 'input window, operand 7']
    #allocation11 [shape = 's32[2]{0}', space=sflag, size = 0x8, scoped, tag = 'scoped memory for emb_loss.1']
    %35 = vsyncpa [#allocation9], 0
    %s36 = scalar_lea.sflag [#allocation9], 1
    %37 = vsyncpa %s36, 0
    %38 = vsyncpa [#allocation11], 0
    %s39 = scalar_lea.sflag [#allocation11], 1
    %40 = vsyncpa %s39, 0
    loop: start=0, step=1, limit=4
    $region2: #{emb_loss.1} parent=1 // loop_pre_header
      _
    $region3: #{emb_loss.1} parent=1 // loop_header
      %s42 = sphi 0, %s46
      %p43 = scmp.ge.s32.totalorder %s42, 4
      %s49 = sphi 0, %s61
      %s50 = sphi 0, %s57
      %s51 = sphi 0, %s49
      %s52 = sphi 0, %s50
      %s53 = sphi 0, %s51
      %s54 = sphi 0, %s52
      %s68 = sphi 0, %s70
      %s71 = sphi 0, %s68
      %s72 = sphi 0, %s71
      %s88 = sphi 0, %s72
      %s112 = sphi 0, %s114
      %s115 = sphi 0, %s112
      %s116 = sphi 0, %s115
      %s132 = sphi 0, %s116
      %s156 = sphi 0, %s158
      %s159 = sphi 0, %s156
      %s160 = sphi 0, %s159
      %s176 = sphi 0, %s160
      %s182 = sphi 0, %s184
      %s185 = sphi 0, %s182
      %s186 = sphi 0, %s185
      %s202 = sphi 0, %s186
    $region4: #{emb_loss.1} parent=1 // loop_header_branch
      %45 = sbr.rel (%p43) target = $region8
    $region5: #{emb_loss.1} parent=1 // loop_body
      %s47 = ssub.s32 %s42, 1
      %s48 = ssub.s32 %s42, 2
      %s55 = sadd.s32 1, %s50
      %p56 = scmp.ge.s32.totalorder %s55, 1
      %s57 = scalar_select %p56, 0, %s55
      %s58 = sadd.s32 1, %s49
      %s59 = scalar_select %p56, %s58, %s49
      %p60 = scmp.ge.s32.totalorder %s59, 2
      %s61 = scalar_select %p60, 0, %s59
      %s62 = sadd.s32 %s49, %s50
      %s63 = sld [smem:[#allocation7 + %s62]]
      %s64 = sadd.s32 %s61, %s57
      %s65 = sld [smem:[#allocation7 + %s64]]
      %s66 = ssub.s32 %s63, %s65
      %p67 = scmp.eq.s32.totalorder %s66, 0
      %s69 = sadd.s32 %s68, 1
      %s70 = scalar_select %p67, %s68, %s69
      %p73 = pneg %p67
      %p74 = scmp.eq.s32.totalorder %s42, 1
      %p75 = por %p73, %p74
      %p76 = scmp.ne.s32.totalorder %s68, %s71
      %p77 = scmp.eq.s32.totalorder %s42, 0
      %p78 = por %p76, %p77
      %p79 = scmp.ne.s32.totalorder %s68, %s71
      %p80 = scmp.eq.s32.totalorder %s47, 1
      %p81 = por %p79, %p80
      %p82 = scmp.ne.s32.totalorder %s71, %s72
      %p83 = scmp.eq.s32.totalorder %s47, 0
      %p84 = por %p82, %p83
      %p85 = scmp.ne.s32.totalorder %s71, %s72
      %p86 = scmp.eq.s32.totalorder %s48, 1
      %p87 = por %p85, %p86
      %p89 = scmp.ne.s32.totalorder %s72, %s88
      %p90 = scmp.eq.s32.totalorder %s48, 0
      %p91 = por %p89, %p90
      %s92 = sadd.s32 %s49, %s50
      %s93 = sshra.s32 %s92, 7
      %s94 = sand.u32 %s92, 127
      %s95 = sadd.s32 %s93, 1
      %s96 = smul.u32 %s95, 128
      %s97 = sshra.s32 %s92, 7
      %s98 = sand.u32 %s92, 127
      %s99 = sadd.s32 %s96, %s98
      %s100 = sld [smem:[#allocation7 + %s99]]
      %s101 = sadd.s32 %s61, %s57
      %s102 = sshra.s32 %s101, 7
      %s103 = sand.u32 %s101, 127
      %s104 = sadd.s32 %s102, 1
      %s105 = smul.u32 %s104, 128
      %s106 = sshra.s32 %s101, 7
      %s107 = sand.u32 %s101, 127
      %s108 = sadd.s32 %s105, %s107
      %s109 = sld [smem:[#allocation7 + %s108]]
      %s110 = ssub.s32 %s100, %s109
      %p111 = scmp.eq.s32.totalorder %s110, 0
      %s113 = sadd.s32 %s112, 1
      %s114 = scalar_select %p111, %s112, %s113
      %p117 = pneg %p111
      %p118 = scmp.eq.s32.totalorder %s42, 1
      %p119 = por %p117, %p118
      %p120 = scmp.ne.s32.totalorder %s112, %s115
      %p121 = scmp.eq.s32.totalorder %s42, 0
      %p122 = por %p120, %p121
      %p123 = scmp.ne.s32.totalorder %s112, %s115
      %p124 = scmp.eq.s32.totalorder %s47, 1
      %p125 = por %p123, %p124
      %p126 = scmp.ne.s32.totalorder %s115, %s116
      %p127 = scmp.eq.s32.totalorder %s47, 0
      %p128 = por %p126, %p127
      %p129 = scmp.ne.s32.totalorder %s115, %s116
      %p130 = scmp.eq.s32.totalorder %s48, 1
      %p131 = por %p129, %p130
      %p133 = scmp.ne.s32.totalorder %s116, %s132
      %p134 = scmp.eq.s32.totalorder %s48, 0
      %p135 = por %p133, %p134
      %s136 = sadd.s32 %s49, %s50
      %s137 = sshra.s32 %s136, 7
      %s138 = sand.u32 %s136, 127
      %s139 = sadd.s32 %s137, 2
      %s140 = smul.u32 %s139, 128
      %s141 = sshra.s32 %s136, 7
      %s142 = sand.u32 %s136, 127
      %s143 = sadd.s32 %s140, %s142
      %s144 = sld [smem:[#allocation7 + %s143]]
      %s145 = sadd.s32 %s61, %s57
      %s146 = sshra.s32 %s145, 7
      %s147 = sand.u32 %s145, 127
      %s148 = sadd.s32 %s146, 2
      %s149 = smul.u32 %s148, 128
      %s150 = sshra.s32 %s145, 7
      %s151 = sand.u32 %s145, 127
      %s152 = sadd.s32 %s149, %s151
      %s153 = sld [smem:[#allocation7 + %s152]]
      %s154 = ssub.s32 %s144, %s153
      %p155 = scmp.eq.s32.totalorder %s154, 0
      %s157 = sadd.s32 %s156, 1
      %s158 = scalar_select %p155, %s156, %s157
      %p161 = pneg %p155
      %p162 = scmp.eq.s32.totalorder %s42, 1
      %p163 = por %p161, %p162
      %p164 = scmp.ne.s32.totalorder %s156, %s159
      %p165 = scmp.eq.s32.totalorder %s42, 0
      %p166 = por %p164, %p165
      %p167 = scmp.ne.s32.totalorder %s156, %s159
      %p168 = scmp.eq.s32.totalorder %s47, 1
      %p169 = por %p167, %p168
      %p170 = scmp.ne.s32.totalorder %s159, %s160
      %p171 = scmp.eq.s32.totalorder %s47, 0
      %p172 = por %p170, %p171
      %p173 = scmp.ne.s32.totalorder %s159, %s160
      %p174 = scmp.eq.s32.totalorder %s48, 1
      %p175 = por %p173, %p174
      %p177 = scmp.ne.s32.totalorder %s160, %s176
      %p178 = scmp.eq.s32.totalorder %s48, 0
      %p179 = por %p177, %p178
      %s180 = ssub.s32 %s49, %s61
      %p181 = scmp.eq.s32.totalorder %s180, 0
      %s183 = sadd.s32 %s182, 1
      %s184 = scalar_select %p181, %s182, %s183
      %p187 = pneg %p181
      %p188 = scmp.eq.s32.totalorder %s42, 1
      %p189 = por %p187, %p188
      %p190 = scmp.ne.s32.totalorder %s182, %s185
      %p191 = scmp.eq.s32.totalorder %s42, 0
      %p192 = por %p190, %p191
      %p193 = scmp.ne.s32.totalorder %s182, %s185
      %p194 = scmp.eq.s32.totalorder %s47, 1
      %p195 = por %p193, %p194
      %p196 = scmp.ne.s32.totalorder %s185, %s186
      %p197 = scmp.eq.s32.totalorder %s47, 0
      %p198 = por %p196, %p197
      %p199 = scmp.ne.s32.totalorder %s185, %s186
      %p200 = scmp.eq.s32.totalorder %s48, 1
      %p201 = por %p199, %p200
      %p203 = scmp.ne.s32.totalorder %s186, %s202
      %p204 = scmp.eq.s32.totalorder %s48, 0
      %p205 = por %p203, %p204
      %p206 = scmp.le.s32.totalorder 1, %s42
      %p207 = scmp.lt.s32.totalorder %s42, 3
      %p208 = pnand %p206, %p207
      %p209 = pneg %p208
      // Predicated region
      $region9: #{emb_loss.1} parent=5 // pred_check
        _
      $region10: #{emb_loss.1} parent=5 // pred_check_branch
        %211 = sbr.rel (%p208) target = $region12
      $region11: #{emb_loss.1} parent=5 // pred_region
        %s212 = ssub.s32 %s42, 1
      $region12: #{emb_loss.1} parent=5 // pred_fallthru
        _
      %p213 = scmp.lt.s32.totalorder %s42, 2
      // Predicated region
      $region13: #{emb_loss.1} parent=5 // pred_check
        %p214 = pneg %p213
      $region14: #{emb_loss.1} parent=5 // pred_check_branch
        %216 = sbr.rel (%p214) target = $region16
      $region15: #{emb_loss.1} parent=5 // pred_region
        // Predicated region
        $region17: #{emb_loss.1} parent=15 // pred_check
          %p217 = pneg %p78
        $region18: #{emb_loss.1} parent=15 // pred_check_branch
          %219 = sbr.rel (%p217) target = $region20
        $region19: #{emb_loss.1} parent=15 // pred_region
          %s220 = sand.u32 %s68, 1
          %s221 = scalar_lea.sflag [#allocation9], %s220
          %s222 = sand.u32 %s68, 1
          %s223 = smul.addr %s222, 8
          %s224 = scalar_lea.vmem [#allocation8], %s223
          %s225 = sadd.s32 %s49, %s50
          %s226 = sld [smem:[#allocation7 + %s225]]
          %s228 = ssub.s32 128, 128
          %229 = vsyncadd %s221, %s228
          %s230 = smul.addr %s226, 128
          %s231 = scalar_lea.hbm %s5, %s230
          %s233 = sshll.u32 %s224, 4
          %s234 = int_to_ptr.vmem [resolvable:$true] %s233
          %236 = dma.hbm_to_vmem [thread:$0]  %s231, 128, %s234, %s221
        $region20: #{emb_loss.1} parent=15 // pred_fallthru
          _
        // Predicated region
        $region21: #{emb_loss.1} parent=15 // pred_check
          %p237 = pneg %p122
        $region22: #{emb_loss.1} parent=15 // pred_check_branch
          %239 = sbr.rel (%p237) target = $region24
        $region23: #{emb_loss.1} parent=15 // pred_region
          %s240 = sadd.s32 %s49, %s50
          %s241 = sshra.s32 %s240, 7
          %s242 = sand.u32 %s240, 127
          %s243 = sadd.s32 %s241, 1
          %s244 = smul.u32 %s243, 128
          %s245 = sshra.s32 %s240, 7
          %s246 = sand.u32 %s240, 127
          %s247 = sadd.s32 %s244, %s246
          %s248 = sld [smem:[#allocation7 + %s247]]
          %s249 = smul.u32 2, %s248
          %p250 = scmp.lt.s32.totalorder %s249, 1
          %s251 = scalar_select %p250, %s249, 1
          %s252 = smul.addr %s251, 8
          %s253 = scalar_lea.vmem %s6, %s252
          %s254 = sadd.s32 %s49, %s50
          %s255 = sshra.s32 %s254, 7
          %s256 = sand.u32 %s254, 127
          %s257 = sadd.s32 %s255, 1
          %s258 = smul.u32 %s257, 128
          %s259 = sshra.s32 %s254, 7
          %s260 = sand.u32 %s254, 127
          %s261 = sadd.s32 %s258, %s260
          %s262 = sld [smem:[#allocation7 + %s261]]
          %s263 = smul.u32 2, %s262
        $region24: #{emb_loss.1} parent=15 // pred_fallthru
          _
        // Predicated region
        $region25: #{emb_loss.1} parent=15 // pred_check
          %p264 = pneg %p166
        $region26: #{emb_loss.1} parent=15 // pred_check_branch
          %266 = sbr.rel (%p264) target = $region28
        $region27: #{emb_loss.1} parent=15 // pred_region
          %s267 = sand.u32 %s156, 1
          %s268 = scalar_lea.sflag [#allocation11], %s267
          %s269 = sand.u32 %s156, 1
          %s270 = smul.addr %s269, 16
          %s271 = scalar_lea.vmem [#allocation10], %s270
          %s272 = sadd.s32 %s49, %s50
          %s273 = sshra.s32 %s272, 7
          %s274 = sand.u32 %s272, 127
          %s275 = sadd.s32 %s273, 2
          %s276 = smul.u32 %s275, 128
          %s277 = sshra.s32 %s272, 7
          %s278 = sand.u32 %s272, 127
          %s279 = sadd.s32 %s276, %s278
          %s280 = sld [smem:[#allocation7 + %s279]]
          %s281 = smul.u32 2, %s280
          %s283 = ssub.s32 256, 256
          %284 = vsyncadd %s268, %s283
          %s285 = smul.addr %s281, 128
          %s286 = scalar_lea.hbm %s7, %s285
          %s287 = sshll.u32 %s271, 4
          %s288 = int_to_ptr.vmem [resolvable:$true] %s287
          %293 = dma.hbm_to_vmem [thread:$0]  %s286, 256, %s288, %s268, 128, 128, 8
        $region28: #{emb_loss.1} parent=15 // pred_fallthru
          _
      $region16: #{emb_loss.1} parent=5 // pred_fallthru
        _
      %p294 = scmp.le.s32.totalorder 1, %s42
      %p295 = scmp.lt.s32.totalorder %s42, 3
      %p296 = pnand %p294, %p295
      %p297 = pneg %p296
      // Predicated region
      $region29: #{emb_loss.1} parent=5 // pred_check
        _
      $region30: #{emb_loss.1} parent=5 // pred_check_branch
        %299 = sbr.rel (%p296) target = $region32
      $region31: #{emb_loss.1} parent=5 // pred_region
        %s300 = ssub.s32 %s42, 1
        %s301 = sand.u32 %s71, 1
        %s302 = scalar_lea.sflag [#allocation9], %s301
        %s303 = sand.u32 %s71, 1
        %s304 = smul.addr %s303, 8
        %s305 = scalar_lea.vmem [#allocation8], %s304
        // Predicated region
        $region33: #{emb_loss.1} parent=31 // pred_check
          %p306 = pneg %p84
        $region34: #{emb_loss.1} parent=31 // pred_check_branch
          %308 = sbr.rel (%p306) target = $region36
        $region35: #{emb_loss.1} parent=31 // pred_region
          %309 = dma.done %s302, 128
        $region36: #{emb_loss.1} parent=31 // pred_fallthru
          _
        %s310 = sand.u32 %s159, 1
        %s311 = scalar_lea.sflag [#allocation11], %s310
        %s312 = sand.u32 %s159, 1
        %s313 = smul.addr %s312, 16
        %s314 = scalar_lea.vmem [#allocation10], %s313
        // Predicated region
        $region37: #{emb_loss.1} parent=31 // pred_check
          %p315 = pneg %p172
        $region38: #{emb_loss.1} parent=31 // pred_check_branch
          %317 = sbr.rel (%p315) target = $region40
        $region39: #{emb_loss.1} parent=31 // pred_region
          %318 = dma.done %s311, 256
        $region40: #{emb_loss.1} parent=31 // pred_fallthru
          _
        %s319 = sand.u32 %s71, 1
        %s320 = scalar_lea.sflag [#allocation9], %s319
        %s321 = sand.u32 %s71, 1
        %s322 = smul.addr %s321, 8
        %s323 = scalar_lea.vmem [#allocation8], %s322
        %p324 = pneg %p84
        %p325 = pneg %p81
        %s326 = sadd.s32 %s51, %s52
        %s327 = sshra.s32 %s326, 7
        %s328 = sand.u32 %s326, 127
        %s329 = sadd.s32 %s327, 1
        %s330 = smul.u32 %s329, 128
        %s331 = sshra.s32 %s326, 7
        %s332 = sand.u32 %s326, 127
        %s333 = sadd.s32 %s330, %s332
        %s334 = sld [smem:[#allocation7 + %s333]]
        %s335 = smul.u32 2, %s334
        %p336 = scmp.lt.s32.totalorder %s335, 1
        %s337 = scalar_select %p336, %s335, 1
        %s338 = smul.addr %s337, 8
        %s339 = scalar_lea.vmem %s6, %s338
        %p340 = pneg %p128
        %p341 = pneg %p125
        %s342 = sand.u32 %s159, 1
        %s343 = scalar_lea.sflag [#allocation11], %s342
        %s344 = sand.u32 %s159, 1
        %s345 = smul.addr %s344, 16
        %s346 = scalar_lea.vmem [#allocation10], %s345
        %p347 = pneg %p172
        %p348 = pneg %p169
        %p349 = pneg %p198
        %p350 = pneg %p195
        %p351 = scmp.lt.s32.totalorder %s51, 1
        %s352 = scalar_select %p351, %s51, 1
        %s353 = smul.addr %s352, 4
        %s354 = scalar_lea.vmem %s8, %s353
        %s355 = sadd.s32 %s51, %s52
        %s356 = sld [smem:[#allocation7 + %s355]]
        %s357 = sadd.s32 %s51, %s52
        %s358 = sshra.s32 %s357, 7
        %s359 = sand.u32 %s357, 127
        %s360 = sadd.s32 %s358, 1
        %s361 = smul.u32 %s360, 128
        %s362 = sshra.s32 %s357, 7
        %s363 = sand.u32 %s357, 127
        %s364 = sadd.s32 %s361, %s363
        %s365 = sld [smem:[#allocation7 + %s364]]
        %s366 = smul.u32 2, %s365
        %p367 = scmp.lt.s32.totalorder %s366, 1
        %s368 = scalar_select %p367, %s366, 1
        %s369 = smul.addr %s368, 8
        %s370 = scalar_lea.vmem %s6, %s369
        %s371 = sadd.s32 %s51, %s52
        %s372 = sshra.s32 %s371, 7
        %s373 = sand.u32 %s371, 127
        %s374 = sadd.s32 %s372, 1
        %s375 = smul.u32 %s374, 128
        %s376 = sshra.s32 %s371, 7
        %s377 = sand.u32 %s371, 127
        %s378 = sadd.s32 %s375, %s377
        %s379 = sld [smem:[#allocation7 + %s378]]
        %s380 = smul.u32 2, %s379
        %s381 = sadd.s32 %s51, %s52
        %s382 = sshra.s32 %s381, 7
        %s383 = sand.u32 %s381, 127
        %s384 = sadd.s32 %s382, 2
        %s385 = smul.u32 %s384, 128
        %s386 = sshra.s32 %s381, 7
        %s387 = sand.u32 %s381, 127
        %s388 = sadd.s32 %s385, %s387
        %s389 = sld [smem:[#allocation7 + %s388]]
        %s390 = smul.u32 2, %s389
        %p391 = scmp.lt.s32.totalorder %s51, 1
        %s392 = scalar_select %p391, %s51, 1
        %s393 = smul.addr %s392, 4
        %s394 = scalar_lea.vmem %s8, %s393
        %p395 = scmp.eq.s32.totalorder %s52, 0
        // Predicated region
        $region41: #{emb_loss.1} parent=31 // pred_check
          %p396 = pneg %p395
        $region42: #{emb_loss.1} parent=31 // pred_check_branch
          %398 = sbr.rel (%p396) target = $region44
        $region43: #{emb_loss.1} parent=31 // pred_region
          %vm399 = vcmask 2048
          %400 = vst.msk [vmem:[%s394] sm:$0x7] %vm399, 0.0
        $region44: #{emb_loss.1} parent=31 // pred_fallthru
          _
        %p401 = scmp.eq.s32.totalorder %s51, 0
        %p402 = pnand %p401, %p395
        %p403 = pneg %p402
        // Predicated region
        $region45: #{emb_loss.1} parent=31 // pred_check
          _
        $region46: #{emb_loss.1} parent=31 // pred_check_branch
          %405 = sbr.rel (%p402) target = $region48
        $region47: #{emb_loss.1} parent=31 // pred_region
          %v406 = vld [vmem:[%s305] sm:$0xff]
          %v407 = vmul.f32 %v406, %v406
          %vm408 = vcmask 261120
          %v409 = vsel %vm408, %v407, 0.0
          %410 = vadd.xlane.f32.xlu0 %v409
          %v411 = vpop.xlane.xlu0 %410
          %v412 = vrot.slane %v411, 4
          %v413 = vadd.f32 %v411, %v412
          %v414 = vrot.slane %v413, 2
          %v415 = vadd.f32 %v413, %v414
          %v416 = vrot.slane %v415, 1
          %v417 = vadd.f32 %v415, %v416
          %s418 = vtos %v417
          %v419 = vstv %s418
          %vm420 = vcmask 0
          %421 = vst.msk [vmem:[%s394] sm:$0x1] %vm420, %v419
          %v422 = vld [vmem:[%s370] sm:$0xff]
          %v423 = vld [vmem:[%s370 + $0x8] sm:$0xff]
          %v424 = vmul.f32 %v422, %v422
          %v425 = vmul.f32 %v423, %v423
          %v426 = vsel %vm408, %v424, 0.0
          %v427 = vsel %vm408, %v425, 0.0
          %v428 = vadd.f32 %v426, %v427
          %429 = vadd.xlane.f32.xlu0 %v428
          %v430 = vpop.xlane.xlu0 %429
          %v431 = vrot.slane %v430, 4
          %v432 = vadd.f32 %v430, %v431
          %v433 = vrot.slane %v432, 2
          %v434 = vadd.f32 %v432, %v433
          %v435 = vrot.slane %v434, 1
          %v436 = vadd.f32 %v434, %v435
          %s437 = vtos %v436
          %v438 = vstv %s437
          %439 = vst.msk [vmem:[%s394 + $0x1] sm:$0x1] %vm420, %v438
          %v440 = vld [vmem:[%s314] sm:$0xff]
          %v441 = vld [vmem:[%s314 + $0x8] sm:$0xf]
          %v442 = vmul.f32 %v440, %v440
          %v443 = vmul.f32 %v441, %v441
          %v444 = vsel %vm408, %v442, 0.0
          %vm445 = vcmask 257024
          %v446 = vsel %vm445, %v443, 0.0
          %v447 = vadd.f32 %v444, %v446
          %448 = vadd.xlane.f32.xlu0 %v447
          %v449 = vpop.xlane.xlu0 %448
          %v450 = vrot.slane %v449, 4
          %v451 = vadd.f32 %v449, %v450
          %v452 = vrot.slane %v451, 2
          %v453 = vadd.f32 %v451, %v452
          %v454 = vrot.slane %v453, 1
          %v455 = vadd.f32 %v453, %v454
          %s456 = vtos %v455
          %v457 = vstv %s456
          %458 = vst.msk [vmem:[%s394 + $0x2] sm:$0x1] %vm420, %v457
        $region48: #{emb_loss.1} parent=31 // pred_fallthru
          _
        %p459 = scmp.lt.s32.totalorder %s51, 1
        %s460 = scalar_select %p459, %s51, 1
        %s461 = smul.addr %s460, 4
        %s462 = scalar_lea.vmem %s8, %s461
        // Predicated region
        $region49: #{emb_loss.1} parent=31 // pred_check
          %p463 = pneg %p195
        $region50: #{emb_loss.1} parent=31 // pred_check_branch
          %465 = sbr.rel (%p463) target = $region52
        $region51: #{emb_loss.1} parent=31 // pred_region
          _
        $region52: #{emb_loss.1} parent=31 // pred_fallthru
          _
      $region32: #{emb_loss.1} parent=5 // pred_fallthru
        _
      %p466 = scmp.le.s32.totalorder 2, %s42
      // Predicated region
      $region53: #{emb_loss.1} parent=5 // pred_check
        %p467 = pneg %p466
      $region54: #{emb_loss.1} parent=5 // pred_check_branch
        %469 = sbr.rel (%p467) target = $region56
      $region55: #{emb_loss.1} parent=5 // pred_region
        %s470 = ssub.s32 %s42, 2
        // Predicated region
        $region57: #{emb_loss.1} parent=55 // pred_check
          %p471 = pneg %p201
        $region58: #{emb_loss.1} parent=55 // pred_check_branch
          %473 = sbr.rel (%p471) target = $region60
        $region59: #{emb_loss.1} parent=55 // pred_region
          %p474 = scmp.lt.s32.totalorder %s53, 1
          %s475 = scalar_select %p474, %s53, 1
          %s476 = smul.addr %s475, 4
          %s477 = scalar_lea.vmem %s8, %s476
        $region60: #{emb_loss.1} parent=55 // pred_fallthru
          _
      $region56: #{emb_loss.1} parent=5 // pred_fallthru
        _
    $region6: #{emb_loss.1} parent=1 // loop_footer
      %s46 = sadd.s32 1, %s42
    $region7: #{emb_loss.1} parent=1 // loop_footer_branch
      %41 = sbr.rel target = $region3
    $region8: #{emb_loss.1} parent=1 // loop_exit
      _
    %478 = vsyncpa [#allocation9], 1
    %s479 = scalar_lea.sflag [#allocation9], 1
    %480 = vsyncpa %s479, 1
    %481 = vsyncpa [#allocation11], 1
    %s482 = scalar_lea.sflag [#allocation11], 1
    %483 = vsyncpa %s482, 1

</llo_original>
